<compile_context>
chip_gen: v7x
topology: tpu7x:2x2x1
jax: 0.10.0
libtpu: 0.0.40
codegen_flags: <defaults>
</compile_context>

<pallas_src>
import functools

import numpy as np
import jax
import jax.numpy as jnp
from jax import lax
from jax.experimental import pallas as pl
from jax.experimental.pallas import tpu as pltpu

LEAKY_SLOPE = 0.01  # torch.nn.LeakyReLU() default negative_slope


def _leaky(x):
    return jnp.where(x >= 0, x, LEAKY_SLOPE * x)


# ----------------------------------------------------------------------------
# pltpu.roll direction self-calibration.  We need t[:, p] = x[:, p + s]; the
# probe (run eagerly ONCE in __main__, before any jit trace) tells us which
# shift sign realises that on this backend.  Calibrating on hardware is the
# most robust option (it measures the actual lowering semantics).
# ----------------------------------------------------------------------------
_ROLL_SIGN = None


def _roll_probe_kernel(x_ref, o_ref):
    o_ref[...] = pltpu.roll(x_ref[...], 1, axis=1)


def _roll_sign():
    global _ROLL_SIGN
    if _ROLL_SIGN is None:
        x = np.arange(8 * 256, dtype=np.float32).reshape(8, 256)
        out = pl.pallas_call(
            _roll_probe_kernel,
            out_shape=jax.ShapeDtypeStruct((8, 256), jnp.float32),
        )(jnp.asarray(x))
        np_like = np.array_equal(np.asarray(out), np.roll(x, 1, axis=1))
        _ROLL_SIGN = -1 if np_like else 1
    return _ROLL_SIGN


# ----------------------------------------------------------------------------
# Host-side helpers: tap boundary masks and parameter packing.
# ----------------------------------------------------------------------------
def _tap_masks_host(H, W):
    """(9, 1, H*W) f32 multiplicative masks (1=valid, 0='same' pad) for the
    9 taps of a 3x3 conv on the flattened spatial (lane) axis."""
    p = np.arange(H * W)
    row, col = p // W, p % W
    planes = []
    for dy in (-1, 0, 1):
        for dx in (-1, 0, 1):
            ok = np.ones(H * W, dtype=bool)
            if dy == -1:
                ok &= row >= 1
            elif dy == 1:
                ok &= row <= H - 2
            if dx == -1:
                ok &= col >= 1
            elif dx == 1:
                ok &= col <= W - 2
            planes.append(ok)
    return jnp.asarray(np.stack(planes).astype(np.float32).reshape(9, 1, H * W))


def _pack_params(params, C, stages):
    """Stack all folded NormConv2d weights/biases into 4 small arrays and a
    static name->index map (weights cast to bf16 once, biases stay f32)."""
    w1, w3, bs, idx = [], [], [], {}

    def addw1(w):                                   # (C, C) 1x1 weight
        w1.append(w.astype(jnp.bfloat16))
        return len(w1) - 1

    def addw3(wk):                                  # (C, 9C) tap-major -> (9, C, C)
        w3.append(jnp.transpose(wk.reshape(C, 9, C), (1, 0, 2)).astype(jnp.bfloat16))
        return len(w3) - 1

    def addb(b):                                    # (C, 1) f32
        bs.append(b)
        return len(bs) - 1

    idx["nin_b"] = addb(params["nin"]["bk"])
    for i in range(stages):
        b0 = params["blocks"][2 * i]
        idx[f"s{i}_b0_nin_w"] = addw1(b0["nin"]["wk"])
        idx[f"s{i}_b0_nin_b"] = addb(b0["nin"]["bk"])
        idx[f"s{i}_b0_conv_w"] = addw3(b0["conv"]["wk"])
        idx[f"s{i}_b0_conv_b"] = addb(b0["conv"]["bk"])
        idx[f"s{i}_mlp_w"] = addw3(params["mlp"][i]["wk"])
        idx[f"s{i}_mlp_b"] = addb(params["mlp"][i]["bk"])
        b1 = params["blocks"][2 * i + 1]
        wn = b1["nin"]["wk"]          # (C, 2C) over torch.cat([g, z], dim=1)
        idx[f"s{i}_b1_nin_gw"] = addw1(wn[:, :C])
        idx[f"s{i}_b1_nin_zw"] = addw1(wn[:, C:])
        idx[f"s{i}_b1_nin_b"] = addb(b1["nin"]["bk"])
        idx[f"s{i}_b1_conv_w"] = addw3(b1["conv"]["wk"])
        idx[f"s{i}_b1_conv_b"] = addb(b1["conv"]["bk"])
        idx[f"s{i}_ups_w"] = addw3(params["ups"][i]["wk"])
        idx[f"s{i}_ups_b"] = addb(params["ups"][i]["bk"])
    fin = params["fin"]
    idx["fin_nin_w"] = addw1(fin["nin"]["wk"])
    idx["fin_nin_b"] = addb(fin["nin"]["bk"])
    idx["fin_conv_w"] = addw3(fin["conv"]["wk"])
    idx["fin_conv_b"] = addb(fin["conv"]["bk"])

    w_nin = params["nin"]["wk"].astype(jnp.bfloat16)   # (C, in_channels)
    return w_nin, jnp.stack(w1), jnp.stack(w3), jnp.stack(bs), idx


# ----------------------------------------------------------------------------
# Fused EncDown forward: ONE pallas_call, grid=(B,), everything in VMEM.
# ----------------------------------------------------------------------------
def enc_down_forward(gs_nchw, params, eps_list, stages=2):
    """gs_nchw: list of (B, Ck, H, W); gs[-1] is the coarsest level.
    Returns (hs, qs, zs) as NCHW arrays, matching the PyTorch module."""
    B = gs_nchw[0].shape[0]
    C = gs_nchw[0].shape[1]
    H0, W0 = gs_nchw[-1].shape[2], gs_nchw[-1].shape[3]

    # pop order (coarse -> fine); gs[-1] is used by nin AND the first block.
    g_pop = [g.reshape(B, g.shape[1], -1) for g in reversed(gs_nchw)]
    eps_flat = [e.reshape(B, C, -1) for e in eps_list]

    lev_H = [H0 * 2 ** l for l in range(stages + 1)]
    lev_W = [W0 * 2 ** l for l in range(stages + 1)]
    lev_N = [h * w for h, w in zip(lev_H, lev_W)]
    for si in range(stages):
        assert g_pop[2 * si].shape[2] == lev_N[si]
        assert g_pop[2 * si + 1].shape[2] == lev_N[si]
        assert eps_flat[si].shape[2] == lev_N[si]
        assert (lev_W[si] & (lev_W[si] - 1)) == 0 and lev_W[si] <= 64
    assert g_pop[2 * stages].shape[2] == lev_N[stages]
    assert lev_N[0] % 128 == 0

    masks = [_tap_masks_host(lev_H[l], lev_W[l]) for l in range(stages + 1)]
    w_nin, W1, W3, BS, idx = _pack_params(params, C, stages)
    sign = _roll_sign()
    n_h = 2 * stages + 1

    # ---------------------------- kernel body --------------------------------
    def kernel(*refs):
        it = iter(refs)
        mrefs = [next(it) for _ in range(stages + 1)]
        arefs = [next(it) for _ in range(2 * stages + 1)]
        erefs = [next(it) for _ in range(stages)]
        wnin_ref = next(it)
        w1_ref = next(it)
        w3_ref = next(it)
        bs_ref = next(it)
        hrefs = [next(it) for _ in range(n_h)]
        qrefs = [next(it) for _ in range(stages)]
        zrefs = [next(it) for _ in range(stages)]
        up_scr = next(it)

        def dot_b(w_bf16, x_f32):
            return jnp.dot(w_bf16, x_f32.astype(jnp.bfloat16),
                           preferred_element_type=jnp.float32)

        def conv3(widx, bidx, x, m_ref, W):
            """3x3 'same' conv as 9 per-tap MXU contractions (no im2col slab)."""
            N = x.shape[1]
            acc = None
            t = 0
            for dy in (-1, 0, 1):
                for dx in (-1, 0, 1):
                    s = dy * W + dx
                    xt = x if s == 0 else pltpu.roll(x, (sign * s) % N, axis=1)
                    if (dy, dx) != (0, 0):
                        xt = xt * m_ref[t]            # (1, N) boundary mask
                    d = dot_b(w3_ref[widx, t], xt)    # (C, C) x (C, N)
                    acc = d if acc is None else acc + d
                    t += 1
            return acc + bs_ref[bidx]

        def rnb(x, a_pairs, nin_bidx, conv_widx, conv_bidx, m_ref, W):
            """VunetRNB: r = x + nin(leaky(a)); return x + conv3x3(leaky(r))."""
            t = None
            for a_val, widx in a_pairs:
                d = dot_b(w1_ref[widx], _leaky(a_val))
                t = d if t is None else t + d
            r = x + t + bs_ref[nin_bidx]
            return x + conv3(conv_widx, conv_bidx, _leaky(r), m_ref, W)

        def up2(h, W):
            """Nearest 2x upsample in flat layout: every output 128-lane chunk
            is a one-hot matmul from a contiguous 32(/64)-lane coarse slice."""
            N = h.shape[1]
            seg = 32 if W <= 32 else 64
            ii = lax.broadcasted_iota(jnp.int32, (seg, 128), 0)
            jj = lax.broadcasted_iota(jnp.int32, (seg, 128), 1)
            if W <= 32:
                src = ((jj // (2 * W)) // 2) * W + (jj % (2 * W)) // 2
            else:
                src = jj // 2
            M = (ii == src).astype(jnp.bfloat16)
            hb = h.astype(jnp.bfloat16)
            for c in range((4 * N) // 128):
                s0 = 32 * c if W <= 32 else 64 * (c // 2)
                up_scr[:, 128 * c:128 * (c + 1)] = jnp.dot(
                    hb[:, s0:s0 + seg], M, preferred_element_type=jnp.float32)
            return up_scr[:, :4 * N]

        # ------------------------------ forward ------------------------------
        H, W = H0, W0
        h = dot_b(wnin_ref[...], arefs[0][0]) + bs_ref[idx["nin_b"]]   # nin (no act)
        oi, ai = 0, 0
        for si in range(stages):
            m_ref = mrefs[si]
            a = arefs[ai][0]
            ai += 1
            h = rnb(h, [(a, idx[f"s{si}_b0_nin_w"])], idx[f"s{si}_b0_nin_b"],
                    idx[f"s{si}_b0_conv_w"], idx[f"s{si}_b0_conv_b"], m_ref, W)
            hrefs[oi][0] = h
            oi += 1
            q = conv3(idx[f"s{si}_mlp_w"], idx[f"s{si}_mlp_b"], h, m_ref, W)
            qrefs[si][0] = q
            # TODO(synk): latent_sample's torch.randn_like noise is supplied as
            # an explicit eps input (exact PyTorch RNG parity is impossible
            # in-kernel; pltpu.prng_* could generate noise if parity is not needed).
            z = q + erefs[si][0]
            zrefs[si][0] = z
            a2 = arefs[ai][0]
            ai += 1
            # torch.cat([g, z], dim=1) + 1x1 nin == split-weight dual input.
            h = rnb(h, [(a2, idx[f"s{si}_b1_nin_gw"]), (z, idx[f"s{si}_b1_nin_zw"])],
                    idx[f"s{si}_b1_nin_b"],
                    idx[f"s{si}_b1_conv_w"], idx[f"s{si}_b1_conv_b"], m_ref, W)
            hrefs[oi][0] = h
            oi += 1
            hu = up2(h, W)                              # nearest x2, in VMEM
            H, W = 2 * H, 2 * W
            h = conv3(idx[f"s{si}_ups_w"], idx[f"s{si}_ups_b"], hu,
                      mrefs[si + 1], W)                 # Upsample's 3x3 conv
        a = arefs[ai][0]
        h = rnb(h, [(a, idx["fin_nin_w"])], idx["fin_nin_b"],
                idx["fin_conv_w"], idx["fin_conv_b"], mrefs[stages], W)
        hrefs[oi][0] = h

    # --------------------------- pallas_call setup ---------------------------
    in_arrays, in_specs = [], []

    def add_in(arr, spec):
        in_arrays.append(arr)
        in_specs.append(spec)

    for m in masks:
        add_in(m, pl.BlockSpec(m.shape, lambda i: (0, 0, 0)))
    for a in g_pop:
        add_in(a, pl.BlockSpec((1, a.shape[1], a.shape[2]), lambda i: (i, 0, 0)))
    for e in eps_flat:
        add_in(e, pl.BlockSpec((1, C, e.shape[2]), lambda i: (i, 0, 0)))
    add_in(w_nin, pl.BlockSpec(w_nin.shape, lambda i: (0, 0)))
    add_in(W1, pl.BlockSpec(W1.shape, lambda i: (0, 0, 0)))
    add_in(W3, pl.BlockSpec(W3.shape, lambda i: (0, 0, 0, 0)))
    add_in(BS, pl.BlockSpec(BS.shape, lambda i: (0, 0, 0)))

    h_levels = [si for si in range(stages) for _ in range(2)] + [stages]
    out_shapes, out_specs = [], []
    for l in h_levels + list(range(stages)) + list(range(stages)):  # hs, qs, zs
        Nk = lev_N[l]
        out_shapes.append(jax.ShapeDtypeStruct((B, C, Nk), jnp.float32))
        out_specs.append(pl.BlockSpec((1, C, Nk), lambda i: (i, 0, 0)))

    # Advisory cost estimate (helps XLA schedule surrounding ops).
    in_ch = w_nin.shape[1]
    flops = 2 * C * in_ch * lev_N[0]
    for si in range(stages):
        N = lev_N[si]
        flops += 2 * C * C * N                       # block0 nin
        flops += 3 * (2 * C * 9 * C * N)             # block0 conv, mlp, block1 conv
        flops += 2 * (2 * C * C * N)                 # block1 nin (g + z halves)
        flops += 2 * C * 32 * 128 * ((4 * N) // 128)  # in-kernel up2
        flops += 2 * C * 9 * C * (4 * N)             # ups conv
    flops += 2 * C * C * lev_N[stages] + 2 * C * 9 * C * lev_N[stages]   # fin
    flops *= B
    bytes_accessed = sum(int(np.prod(a.shape)) * a.dtype.itemsize for a in in_arrays)
    bytes_accessed += sum(int(np.prod(s.shape)) * 4 for s in out_shapes)
    cost = pl.CostEstimate(flops=int(flops), transcendentals=0,
                           bytes_accessed=int(bytes_accessed))

    outs = pl.pallas_call(
        kernel,
        out_shape=tuple(out_shapes),
        grid=(B,),
        in_specs=in_specs,
        out_specs=tuple(out_specs),
        scratch_shapes=[pltpu.VMEM((C, lev_N[stages]), jnp.float32)],
        compiler_params=pltpu.CompilerParams(
            dimension_semantics=("parallel",),        # 1 image per TC on v7x
            vmem_limit_bytes=32 * 1024 * 1024),
        cost_estimate=cost,
    )(*in_arrays)

    outs = list(outs)
    hs_f = outs[:n_h]
    qs_f = outs[n_h:n_h + stages]
    zs_f = outs[n_h + stages:]

    def unflat(t, l):
        return t.reshape(B, C, lev_H[l], lev_W[l])

    hs = [unflat(t, l) for t, l in zip(hs_f, h_levels)]
    qs = [unflat(qs_f[i], i) for i in range(stages)]
    zs = [unflat(zs_f[i], i) for i in range(stages)]
    return hs, qs, zs


# ----------------------------------------------------------------------------
# Deterministic parameter init (NormConv2d with weight_norm); stores both the
# raw form (for the XLA reference) and the folded kernel form.
# ----------------------------------------------------------------------------
def _norm_conv_params(key, cin, cout, k):
    kv, kb, kg, kbe = jax.random.split(key, 4)
    v = 0.1 * jax.random.normal(kv, (cout, cin, k, k), jnp.float32)
    w = v                     # weight_norm(dim=0) at init: g = ||v||  =>  w == v
    b = 0.01 * jax.random.normal(kb, (cout,), jnp.float32)
    gamma = 1.0 + 0.1 * jax.random.normal(kg, (cout,), jnp.float32)
    beta = 0.1 * jax.random.normal(kbe, (cout,), jnp.float32)

    # fold gamma*(conv(x)+b)+beta -> conv_{gamma*w}(x) + (gamma*b+beta)   (exact, f32)
    w_eff = gamma[:, None, None, None] * w
    wk = jnp.transpose(w_eff, (0, 2, 3, 1)).reshape(cout, k * k * cin)  # tap-major
    bk = (gamma * b + beta).reshape(cout, 1)
    return {"w": w, "b": b, "gamma": gamma, "beta": beta, "wk": wk, "bk": bk}


def init_enc_down(key, channels, in_channels, stages=2):
    keys = iter(jax.random.split(key, 64))
    conv = lambda cin, cout, k: _norm_conv_params(next(keys), cin, cout, k)
    rnb = lambda a_ch: {"nin": conv(a_ch, channels, 1),
                        "conv": conv(channels, channels, 3)}
    p = {"nin": conv(in_channels, channels, 1), "blocks": [], "mlp": [], "ups": []}
    for _ in range(stages):
        p["blocks"].append(rnb(channels))
        p["mlp"].append(conv(channels, channels, 3))
        p["blocks"].append(rnb(2 * channels))
        p["ups"].append(conv(channels, channels, 3))
    p["fin"] = rnb(channels)
    return p


# ----------------------------------------------------------------------------
# Pure-XLA reference of the same module (for the built-in numerical check)
# ----------------------------------------------------------------------------
def _ref_norm_conv(x, layer):
    k = layer["w"].shape[-1]
    out = lax.conv_general_dilated(
        x, layer["w"], window_strides=(1, 1), padding=[(k // 2, k // 2)] * 2,
        dimension_numbers=("NCHW", "OIHW", "NCHW"),
        precision=lax.Precision.HIGHEST)
    out = out + layer["b"][None, :, None, None]
    return layer["gamma"][None, :, None, None] * out + layer["beta"][None, :, None, None]


def _ref_rnb(x, a, blk):
    r = x + _ref_norm_conv(_leaky(a), blk["nin"])
    return x + _ref_norm_conv(_leaky(r), blk["conv"])


def ref_enc_down(gs_nchw, params, eps_list, stages=2):
    gs = list(gs_nchw)
    hs, qs, zs = [], [], []
    h = _ref_norm_conv(gs[-1], params["nin"])
    for i in range(stages):
        h = _ref_rnb(h, gs.pop(), params["blocks"][2 * i]); hs.append(h)
        q = _ref_norm_conv(h, params["mlp"][i]); qs.append(q)
        z = q + eps_list[i].reshape(q.shape); zs.append(z)
        gz = jnp.concatenate([gs.pop(), z], axis=1)
        h = _ref_rnb(h, gz, params["blocks"][2 * i + 1]); hs.append(h)
        h = _ref_norm_conv(jnp.repeat(jnp.repeat(h, 2, axis=2), 2, axis=3),
                           params["ups"][i])
    h = _ref_rnb(h, gs.pop(), params["fin"]); hs.append(h)
    return hs, qs, zs


# ----------------------------------------------------------------------------
if __name__ == "__main__":
    B, C, S, STAGES = 2, 8, 16, 2   # batch, channels (= in_channels), coarsest spatial

    _roll_sign()   # calibrate pltpu.roll direction eagerly, before any jit trace

    key = jax.random.PRNGKey(0)
    k_params, k_gs, k_eps = jax.random.split(key, 3)
    params = init_enc_down(k_params, channels=C, in_channels=C, stages=STAGES)

    # gs stack produced by an EncUp: fine -> coarse, gs[-1] is the coarsest.
    gs_shapes = [(B, C, 4 * S, 4 * S),
                 (B, C, 2 * S, 2 * S),
                 (B, C, 2 * S, 2 * S),
                 (B, C, S, S),
                 (B, C, S, S)]
    gkeys = jax.random.split(k_gs, len(gs_shapes))
    gs = [jax.random.normal(gk, shp, jnp.float32)
          for gk, shp in zip(gkeys, gs_shapes)]

    # latent_sample noise (stddev = 1), one tensor per stage, shared with the reference
    ekeys = jax.random.split(k_eps, STAGES)
    eps = [jax.random.normal(ekeys[0], (B, C, S * S), jnp.float32),
           jax.random.normal(ekeys[1], (B, C, 4 * S * S), jnp.float32)]

    fwd = jax.jit(functools.partial(enc_down_forward, stages=STAGES))
    hs, qs, zs = fwd(gs, params, eps)
    jax.block_until_ready((hs, qs, zs))

    # shapes (NCHW, matching the PyTorch module)
    assert [tuple(h.shape) for h in hs] == [
        (B, C, S, S), (B, C, S, S),
        (B, C, 2 * S, 2 * S), (B, C, 2 * S, 2 * S),
        (B, C, 4 * S, 4 * S)]
    assert [tuple(q.shape) for q in qs] == [(B, C, S, S), (B, C, 2 * S, 2 * S)]
    assert [tuple(z.shape) for z in zs] == [(B, C, S, S), (B, C, 2 * S, 2 * S)]

    # numerics vs. a pure-XLA (HIGHEST precision) reference of the same module.
    # Tolerance 3e-2: the kernel uses bf16 MXU operands (per the perf review);
    # accumulation, biases and residuals are f32.
    ref_fwd = jax.jit(functools.partial(ref_enc_down, stages=STAGES))
    hs_r, qs_r, zs_r = ref_fwd(gs, params, eps)
    for got, want in zip(hs + qs + zs, hs_r + qs_r + zs_r):
        np.testing.assert_allclose(np.asarray(got), np.asarray(want),
                                   rtol=3e-2, atol=3e-2)

    print("KERNEL_OK")
</pallas_src>

<mosaic_0001>
module attributes {stable_mosaic.version = 11 : i64} {
  func.func @_roll_probe_kernel(%arg0: memref<8x256xf32, #tpu.memory_space<vmem>>, %arg1: memref<8x256xf32, #tpu.memory_space<vmem>>) attributes {dimension_semantics = [], scalar_prefetch = 0 : i64, scratch_operands = 0 : i64, tpu.core_type = #tpu.core_type<tc>} {
    %c0 = arith.constant 0 : index
    %c0_0 = arith.constant 0 : index
    %0 = vector.load %arg0[%c0, %c0_0] : memref<8x256xf32, #tpu.memory_space<vmem>>, vector<8x256xf32>
    %c1_i32 = arith.constant 1 : i32
    %1 = tpu.dynamic_rotate %0 by %c1_i32 dim 1 : vector<8x256xf32>, i32 -> vector<8x256xf32>
    %c0_1 = arith.constant 0 : index
    %c0_2 = arith.constant 0 : index
    %2 = vector.load %arg1[%c0_1, %c0_2] : memref<8x256xf32, #tpu.memory_space<vmem>>, vector<8x256xf32>
    tpu.vector_store %arg1[%c0_1, %c0_2], %1 {strides = array<i32>} : memref<8x256xf32, #tpu.memory_space<vmem>>, vector<8x256xf32>,
    return
  }
}

</mosaic_0001>

<llo_original>
// kernel: tpu_custom_call.1
$region0: #{tpu_custom_call.1}
  #allocation0 [shape = 'u32[]', space=smem, size = 0x4, offset = 0x4, fixed_abs, tag = 'smem constant byte address 0x4 - core index']
  #allocation1 [shape = 'u32[144,128]{1,0:T(1,128)}', space=vmem, size = 0x12000, scoped, tag = 'internal scratch']
  %s0 = inlined_call_operand.hbm [shape: f32[8,256], index: 0, kind: input, shape index: {}]
  %s1 = inlined_call_operand.hbm [shape: f32[8,256], index: 1, kind: output, shape index: {}]
  %s2 = sld [smem:[#allocation0]]
  $region18: #{tpu_custom_call.1} parent=0
    _
  %s4 = ssub.s32 1, %s2
  %s5 = scalar_select 0, %s4, %s2
  $region1: #{tpu_custom_call.1} parent=0
    #allocation2 [shape = 'u8[8192]{0}', space=vmem, size = 0x2000, scoped, tag = 'input window, operand 0, single buffered']
    #allocation3 [shape = 's32[1]{0}', space=sflag, size = 0x4, scoped, tag = 'scoped memory for tpu_custom_call.1']
    #allocation4 [shape = 's32[1]{0}', space=sflag, size = 0x4, scoped, tag = 'scoped memory for tpu_custom_call.1']
    #allocation5 [shape = 'u8[8192]{0}', space=vmem, size = 0x2000, scoped, tag = 'output window, operand 0, single buffered']
    %6 = vsyncpa [#allocation3], 0
    %7 = vsyncpa [#allocation4], 0
    // Predicated region
    $region2: #{tpu_custom_call.1} parent=1 // pred_check
      _
    $region3: #{tpu_custom_call.1} parent=1 // pred_check_branch
      %9 = sbr.rel (0) target = $region5
    $region4: #{tpu_custom_call.1} parent=1 // pred_region
      %s11 = ssub.s32 256, 256
      %12 = vsyncadd [#allocation3], %s11
      %s14 = sshll.u32 [#allocation2], 4
      %s15 = int_to_ptr.vmem [resolvable:$true] %s14
      %17 = dma.hbm_to_vmem [thread:$0]  %s0, 256, %s15, [#allocation3]
    $region5: #{tpu_custom_call.1} parent=1 // pred_fallthru
      _
    // Predicated region
    $region6: #{tpu_custom_call.1} parent=1 // pred_check
      _
    $region7: #{tpu_custom_call.1} parent=1 // pred_check_branch
      %19 = sbr.rel (0) target = $region9
    $region8: #{tpu_custom_call.1} parent=1 // pred_region
      %20 = dma.done [#allocation3], 256
    $region9: #{tpu_custom_call.1} parent=1 // pred_fallthru
      _
    %v21 = vld [vmem:[#allocation2] sm:$0xff]
    %v22 = vld [vmem:[#allocation2 + $0x8] sm:$0xff]
    %23 = vrot.lane.b32.xlu0 %v21, 1
    %v24 = vpop.permute.xlu0 %23
    %25 = vrot.lane.b32.xlu0 %v22, 1
    %v26 = vpop.permute.xlu0 %25
    %v27 = vlaneseq
    %v28 = vand.u32 %v27, 127
    %vm29 = vcmp.lt.s32.totalorder %v28, 1
    %v30 = vsel %vm29, %v24, %v26
    %v31 = vsel %vm29, %v26, %v24
    %32 = vst [vmem:[#allocation5] sm:$0xff] %v31
    %33 = vst [vmem:[#allocation5 + $0x8] sm:$0xff] %v30
    // Predicated region
    $region10: #{tpu_custom_call.1} parent=1 // pred_check
      _
    $region11: #{tpu_custom_call.1} parent=1 // pred_check_branch
      %35 = sbr.rel (0) target = $region13
    $region12: #{tpu_custom_call.1} parent=1 // pred_region
      %s37 = ssub.s32 256, 256
      %38 = vsyncadd [#allocation4], %s37
      %s40 = sshll.u32 [#allocation5], 4
      %s41 = int_to_ptr.vmem [resolvable:$true] %s40
      %43 = dma.vmem_to_hbm [thread:$0]  %s41, 256, %s1, [#allocation4]
    $region13: #{tpu_custom_call.1} parent=1 // pred_fallthru
      _
    // Predicated region
    $region14: #{tpu_custom_call.1} parent=1 // pred_check
      _
    $region15: #{tpu_custom_call.1} parent=1 // pred_check_branch
      %45 = sbr.rel (0) target = $region17
    $region16: #{tpu_custom_call.1} parent=1 // pred_region
      %46 = dma.done [#allocation4], 256
    $region17: #{tpu_custom_call.1} parent=1 // pred_fallthru
      _
    %47 = vsyncpa [#allocation3], 1
    %48 = vsyncpa [#allocation4], 1

</llo_original>
